<compile_context>
chip_gen: v7x
topology: tpu7x:2x2x1
jax: 0.10.0
libtpu: 0.0.40
codegen_flags: <defaults>
</compile_context>

<pallas_src>
import jax
import jax.numpy as jnp
from jax.experimental import pallas as pl
from jax.experimental.pallas import tpu as pltpu


def _round_up(x, m):
    return (x + m - 1) // m * m


def _make_patch_embed_kernel(e_real):
    """Kernel factory; e_real = un-padded embedding dim for the LN statistics."""
    inv_e = 1.0 / float(e_real)

    def kernel(p_ref, w_ref, prm_ref, o_ref):
        # p_ref:   (tm, Kp)  bf16 patches (K zero-padded)
        # w_ref:   (Kp, Ep)  bf16 weight, (K, E) zero-padded
        # prm_ref: (3,  Ep)  f32: row0 = conv bias, row1 = gamma, row2 = beta
        # o_ref:   (tm, Ep)
        y = jnp.dot(p_ref[...], w_ref[...], preferred_element_type=jnp.float32)
        bias = prm_ref[0:1, :]
        gamma = prm_ref[1:2, :]
        beta = prm_ref[2:3, :]
        y = y + bias  # padded E columns stay exactly 0 (zero weights + zero bias)

        # LayerNorm over the real E columns only. Padded columns of y are 0,
        # so plain full-row sums divided by e_real give correct mean / E[y^2].
        # Note: single-pass E[y^2]-E[y]^2 in f32 is within 5e-3 of nn.LayerNorm
        # for this module's magnitudes (two-pass would need a lane mask).
        mean = jnp.sum(y, axis=-1, keepdims=True) * inv_e
        mean_sq = jnp.sum(y * y, axis=-1, keepdims=True) * inv_e
        var = mean_sq - mean * mean  # biased variance (matches nn.LayerNorm)
        y_norm = (y - mean) * jax.lax.rsqrt(var + 1e-5)
        out = y_norm * gamma + beta  # padded cols: garbage * 0 + 0 = 0
        o_ref[...] = out.astype(o_ref.dtype)

    return kernel


def _vmem_capacity_bytes():
    """Per-core VMEM capacity; conservative 64 MiB (v7x) fallback."""
    try:
        return int(pltpu.get_tpu_info().vmem_capacity_bytes)
    except Exception:
        return 64 * 1024 * 1024


def _pick_tile_m(M, Kp, Ep, out_itemsize, n_patch_buf, budget):
    """Largest 16-multiple M-tile whose working set fits `budget` bytes."""
    per_row = (n_patch_buf * Kp * 2          # bf16 patches stream (N-buffered)
               + 2 * Ep * out_itemsize       # double-buffered output tile
               + 4 * Ep * 4)                 # f32 matmul result + LN temporaries
    fixed = (Kp * Ep * 2                     # resident (single-buffered) weight
             + 3 * Ep * 4                    # params slab
             + (2 << 20))                    # headroom
    max_rows = max(16, (budget - fixed) // per_row)

    cap = min(max_rows, _round_up(M, 16))    # never over-pad tiny M
    if M >= 32:                              # >= 2 grid steps -> both v7x TCs busy
        cap = min(cap, _round_up((M + 1) // 2, 16))

    cands = [c for c in (1024, 896, 768, 640, 512, 384, 256, 128, 96, 64, 48, 32, 16)
             if c <= cap]
    if not cands:
        return 16
    best = cands[0]
    for c in cands:                          # prefer a divisor of M: no M-pad slice
        if M % c == 0 and 2 * c >= best:
            return c
    return best


def patch_embedding(x, conv_w, conv_b, ln_gamma, ln_beta, patch_size,
                    *, compute_dtype=jnp.bfloat16):
    """x: (N, C, H, W) (NCHW, like PyTorch). Returns (N, H'*W', E) in x.dtype."""
    N, C, H, W = x.shape
    P = patch_size
    E = conv_w.shape[0]
    assert conv_w.shape == (E, C, P, P)
    Hp, Wp = H // P, W // P
    M = N * Hp * Wp
    K = C * P * P

    # --- patchify (XLA glue). Cast to bf16 FIRST so the transpose moves half
    # the bytes; rows flattened in (c, ph, pw) order to match conv_w (E,C,P,P).
    # TODO(synk): fold this gather into the kernel DMA (pl.Element index maps
    # over (n, hp, wp), or memory_space=pl.ANY + make_async_copy of contiguous
    # (P, W) slabs) to remove the extra HBM round trip of the (M, K) matrix.
    xc = x.astype(compute_dtype)
    patches = xc.reshape(N, C, Hp, P, Wp, P)
    patches = jnp.transpose(patches, (0, 2, 4, 1, 3, 5)).reshape(M, K)
    w_mat = conv_w.reshape(E, K).T.astype(compute_dtype)            # (K, E)

    # --- lane-align K and E (zero padding is matmul/LN invariant, see kernel).
    Kp = _round_up(K, 128)
    Ep = _round_up(E, 128)
    if Kp != K:
        patches = jnp.pad(patches, ((0, 0), (0, Kp - K)))
        w_mat = jnp.pad(w_mat, ((0, Kp - K), (0, 0)))
    if Ep != E:
        w_mat = jnp.pad(w_mat, ((0, 0), (0, Ep - E)))

    # bias / gamma / beta folded into one f32 slab (3, Ep).
    params = jnp.stack([conv_b, ln_gamma, ln_beta]).astype(jnp.float32)
    if Ep != E:
        params = jnp.pad(params, ((0, 0), (0, Ep - E)))

    # --- tiling / VMEM budget (generation aware).
    out_itemsize = jnp.dtype(x.dtype).itemsize
    n_patch_buf = 3 if Kp <= 512 else 2   # deepen pipeline when per-tile compute is short
    budget = max(32 * 1024 * 1024,
                 min(int(0.75 * _vmem_capacity_bytes()), 100 * 1024 * 1024))
    tm = _pick_tile_m(M, Kp, Ep, out_itemsize, n_patch_buf, budget)
    Mp = _round_up(M, tm)
    if Mp != M:
        patches = jnp.pad(patches, ((0, Mp - M), (0, 0)))

    kernel = _make_patch_embed_kernel(E)
    out_shape = jax.ShapeDtypeStruct((Mp, Ep), x.dtype)
    grid = (Mp // tm,)

    def _call(use_buffer_hints):
        if use_buffer_hints:
            in_specs = [
                # M-streamed patches: deeper buffering when K is small.
                pl.BlockSpec((tm, Kp), lambda i: (i, 0),
                             pipeline_mode=pl.Buffered(n_patch_buf)),
                # grid-invariant operands: single buffer, DMA'd once.
                pl.BlockSpec((Kp, Ep), lambda i: (0, 0),
                             pipeline_mode=pl.Buffered(1)),
                pl.BlockSpec((3, Ep), lambda i: (0, 0),
                             pipeline_mode=pl.Buffered(1)),
            ]
        else:
            in_specs = [
                pl.BlockSpec((tm, Kp), lambda i: (i, 0)),
                pl.BlockSpec((Kp, Ep), lambda i: (0, 0)),
                pl.BlockSpec((3, Ep), lambda i: (0, 0)),
            ]
        return pl.pallas_call(
            kernel,
            out_shape=out_shape,
            grid_spec=pltpu.PrefetchScalarGridSpec(
                num_scalar_prefetch=0,
                grid=grid,
                in_specs=in_specs,
                out_specs=pl.BlockSpec((tm, Ep), lambda i: (i, 0)),
            ),
            compiler_params=pltpu.CompilerParams(
                dimension_semantics=("parallel",),
                vmem_limit_bytes=int(budget),
            ),
        )(patches, w_mat, params)

    try:
        out = _call(True)
    except Exception:
        # pl.Buffered buffer-count hints are best-effort; fall back to the
        # default double-buffering if this JAX build rejects them.
        out = _call(False)

    out = out[:M, :E]
    return out.reshape(N, Hp * Wp, E)


def _reference(x, conv_w, conv_b, ln_gamma, ln_beta, patch_size,
               compute_dtype=jnp.bfloat16):
    """Pure-JAX reference matching the PyTorch module (bf16 conv inputs,
    f32 accumulation, to mirror the kernel's numerics)."""
    y = jax.lax.conv_general_dilated(
        x.astype(compute_dtype), conv_w.astype(compute_dtype),
        window_strides=(patch_size, patch_size), padding="VALID",
        dimension_numbers=("NCHW", "OIHW", "NCHW"),
        preferred_element_type=jnp.float32)
    y = y + conv_b[None, :, None, None]
    y = jnp.transpose(y, (0, 2, 3, 1))                              # NHWC
    mean = jnp.mean(y, axis=-1, keepdims=True)
    var = jnp.mean((y - mean) ** 2, axis=-1, keepdims=True)
    y = (y - mean) / jnp.sqrt(var + 1e-5) * ln_gamma + ln_beta
    N, Hp, Wp, E = y.shape
    return y.reshape(N, Hp * Wp, E).astype(x.dtype)


if __name__ == "__main__":
    key = jax.random.PRNGKey(0)
    k_x, k_w, k_b, k_g, k_bt = jax.random.split(key, 5)

    N, C, H, W = 2, 3, 16, 16          # Conv2d in_channels is fixed at 3
    patch_size = 4
    emb_dim = 32

    x = jax.random.normal(k_x, (N, C, H, W), dtype=jnp.float32)
    conv_w = jax.random.normal(k_w, (emb_dim, C, patch_size, patch_size),
                               dtype=jnp.float32) * 0.05
    conv_b = jax.random.normal(k_b, (emb_dim,), dtype=jnp.float32) * 0.05
    ln_gamma = 1.0 + 0.1 * jax.random.normal(k_g, (emb_dim,), dtype=jnp.float32)
    ln_beta = 0.1 * jax.random.normal(k_bt, (emb_dim,), dtype=jnp.float32)

    out = patch_embedding(x, conv_w, conv_b, ln_gamma, ln_beta, patch_size)
    out = jax.block_until_ready(out)

    ref = _reference(x, conv_w, conv_b, ln_gamma, ln_beta, patch_size)
    assert out.shape == (N, (H // patch_size) * (W // patch_size), emb_dim)
    assert jnp.allclose(out, ref, atol=5e-3, rtol=5e-3), float(
        jnp.max(jnp.abs(out - ref)))

    print("KERNEL_OK")
</pallas_src>

<mosaic_0001>
module attributes {stable_mosaic.version = 11 : i64} {
  func.func @kernel(%arg0: i32, %arg1: memref<16x128xbf16, #tpu.memory_space<vmem>>, %arg2: memref<128x128xbf16, #tpu.memory_space<vmem>>, %arg3: memref<3x128xf32, #tpu.memory_space<vmem>>, %arg4: memref<16x128xf32, #tpu.memory_space<vmem>>) attributes {dimension_semantics = [#tpu.dimension_semantics<parallel>], iteration_bounds = array<i64: 2>, scalar_prefetch = 0 : i64, scratch_operands = 0 : i64, tpu.core_type = #tpu.core_type<tc>, window_params = [{transform_indices = @transform_0, window_bounds = array<i64: 16, 128>}, {pipeline_mode = #tpu.pipeline_mode<synchronous>, transform_indices = @transform_1, window_bounds = array<i64: 128, 128>}, {pipeline_mode = #tpu.pipeline_mode<synchronous>, transform_indices = @transform_2, window_bounds = array<i64: 3, 128>}, {transform_indices = @transform_3, window_bounds = array<i64: 16, 128>}]} {
    %c0 = arith.constant 0 : index
    %c0_0 = arith.constant 0 : index
    %0 = vector.load %arg1[%c0, %c0_0] : memref<16x128xbf16, #tpu.memory_space<vmem>>, vector<16x128xbf16>
    %c0_1 = arith.constant 0 : index
    %c0_2 = arith.constant 0 : index
    %1 = vector.load %arg2[%c0_1, %c0_2] : memref<128x128xbf16, #tpu.memory_space<vmem>>, vector<128x128xbf16>
    %cst = arith.constant dense<0.000000e+00> : vector<16x128xf32>
    %2 = tpu.matmul %0, %1, %cst {dimension_numbers = #tpu.dot_dimension_numbers<[1], [0], [0], [1], [0, 0, 1, 1], [], []>} : vector<16x128xbf16>, vector<128x128xbf16>, vector<16x128xf32> -> vector<16x128xf32>
    %c0_3 = arith.constant 0 : index
    %c0_4 = arith.constant 0 : index
    %3 = vector.load %arg3[%c0_3, %c0_4] : memref<3x128xf32, #tpu.memory_space<vmem>>, vector<1x128xf32>
    %c1 = arith.constant 1 : index
    %c0_5 = arith.constant 0 : index
    %4 = vector.load %arg3[%c1, %c0_5] : memref<3x128xf32, #tpu.memory_space<vmem>>, vector<1x128xf32>
    %c2 = arith.constant 2 : index
    %c0_6 = arith.constant 0 : index
    %5 = vector.load %arg3[%c2, %c0_6] : memref<3x128xf32, #tpu.memory_space<vmem>>, vector<1x128xf32>
    %6 = vector.broadcast %3 : vector<1x128xf32> to vector<16x128xf32>
    %7 = arith.addf %2, %6 : vector<16x128xf32>
    %cst_7 = arith.constant dense<0.000000e+00> : vector<16xf32>
    %8 = vector.multi_reduction <add>, %7, %cst_7 [1] : vector<16x128xf32> to vector<16xf32>
    %9 = vector.shape_cast %8 : vector<16xf32> to vector<16x1xf32>
    %cst_8 = arith.constant 3.125000e-02 : f32
    %10 = vector.broadcast %cst_8 : f32 to vector<16x1xf32>
    %11 = arith.mulf %9, %10 : vector<16x1xf32>
    %12 = arith.mulf %7, %7 : vector<16x128xf32>
    %cst_9 = arith.constant dense<0.000000e+00> : vector<16xf32>
    %13 = vector.multi_reduction <add>, %12, %cst_9 [1] : vector<16x128xf32> to vector<16xf32>
    %14 = vector.shape_cast %13 : vector<16xf32> to vector<16x1xf32>
    %cst_10 = arith.constant 3.125000e-02 : f32
    %15 = vector.broadcast %cst_10 : f32 to vector<16x1xf32>
    %16 = arith.mulf %14, %15 : vector<16x1xf32>
    %17 = arith.mulf %11, %11 : vector<16x1xf32>
    %18 = arith.subf %16, %17 : vector<16x1xf32>
    %19 = vector.broadcast %11 : vector<16x1xf32> to vector<16x128xf32>
    %20 = arith.subf %7, %19 : vector<16x128xf32>
    %cst_11 = arith.constant 9.99999974E-6 : f32
    %21 = vector.broadcast %cst_11 : f32 to vector<16x1xf32>
    %22 = arith.addf %18, %21 : vector<16x1xf32>
    %23 = math.rsqrt %22 : vector<16x1xf32>
    %24 = vector.broadcast %23 : vector<16x1xf32> to vector<16x128xf32>
    %25 = arith.mulf %20, %24 : vector<16x128xf32>
    %26 = vector.broadcast %4 : vector<1x128xf32> to vector<16x128xf32>
    %27 = arith.mulf %25, %26 : vector<16x128xf32>
    %28 = vector.broadcast %5 : vector<1x128xf32> to vector<16x128xf32>
    %29 = arith.addf %27, %28 : vector<16x128xf32>
    %c0_12 = arith.constant 0 : index
    %c0_13 = arith.constant 0 : index
    %30 = vector.load %arg4[%c0_12, %c0_13] : memref<16x128xf32, #tpu.memory_space<vmem>>, vector<16x128xf32>
    tpu.vector_store %arg4[%c0_12, %c0_13], %29 {strides = array<i32>} : memref<16x128xf32, #tpu.memory_space<vmem>>, vector<16x128xf32>,
    return
  }
  func.func @transform_0(%arg0: i32) -> (i32, i32) {
    %c0_i32 = arith.constant 0 : i32
    %c0_i32_0 = arith.constant 0 : i32
    return %arg0, %c0_i32 : i32, i32
  }
  func.func @transform_1(%arg0: i32) -> (i32, i32) {
    %c0_i32 = arith.constant 0 : i32
    %c0_i32_0 = arith.constant 0 : i32
    %c0_i32_1 = arith.constant 0 : i32
    return %c0_i32, %c0_i32_0 : i32, i32
  }
  func.func @transform_2(%arg0: i32) -> (i32, i32) {
    %c0_i32 = arith.constant 0 : i32
    %c0_i32_0 = arith.constant 0 : i32
    %c0_i32_1 = arith.constant 0 : i32
    return %c0_i32, %c0_i32_0 : i32, i32
  }
  func.func @transform_3(%arg0: i32) -> (i32, i32) {
    %c0_i32 = arith.constant 0 : i32
    %c0_i32_0 = arith.constant 0 : i32
    return %arg0, %c0_i32 : i32, i32
  }
}

</mosaic_0001>

<llo_original>
// kernel: tpu_custom_call.1
$region0: #{tpu_custom_call.1}
  #allocation0 [shape = 'u32[]', space=smem, size = 0x4, offset = 0x4, fixed_abs, tag = 'smem constant byte address 0x4 - core index']
  #allocation1 [shape = 'u32[144,128]{1,0:T(1,128)}', space=vmem, size = 0x12000, scoped, tag = 'internal scratch']
  %s0 = inlined_call_operand.hbm [shape: bf16[32,128], index: 0, kind: input, shape index: {}]
  %s1 = inlined_call_operand.hbm [shape: bf16[128,128], index: 1, kind: input, shape index: {}]
  %s2 = inlined_call_operand.vmem [shape: f32[3,128], index: 2, kind: input, shape index: {}]
  %s3 = inlined_call_operand.hbm [shape: f32[32,128], index: 3, kind: output, shape index: {}]
  %s4 = sld [smem:[#allocation0]]
  $region53: #{tpu_custom_call.1} parent=0
    _
  %s6 = ssub.s32 1, %s4
  %s7 = scalar_select 0, %s6, %s4
  $region1: #{tpu_custom_call.1} parent=0
    #allocation2 [shape = 'u8[8192]{0}', space=vmem, size = 0x2000, scoped, tag = 'input window, operand 0']
    #allocation3 [shape = 's32[2]{0}', space=sflag, size = 0x8, scoped, tag = 'scoped memory for tpu_custom_call.1']
    #allocation4 [shape = 's32[2]{0}', space=sflag, size = 0x8, scoped, tag = 'scoped memory for tpu_custom_call.1']
    #allocation5 [shape = 'u8[32768]{0}', space=vmem, size = 0x8000, scoped, tag = 'input window, operand 1, single buffered']
    #allocation6 [shape = 's32[1]{0}', space=sflag, size = 0x4, scoped, tag = 'scoped memory for tpu_custom_call.1']
    #allocation7 [shape = 'u8[16384]{0}', space=vmem, size = 0x4000, scoped, tag = 'output window, operand 0']
    %8 = vsyncpa [#allocation3], 0
    %s9 = scalar_lea.sflag [#allocation3], 1
    %10 = vsyncpa %s9, 0
    %11 = vsyncpa [#allocation6], 0
    %12 = vsyncpa [#allocation4], 0
    %s13 = scalar_lea.sflag [#allocation4], 1
    %14 = vsyncpa %s13, 0
    loop: start=0, step=1, limit=4
    $region2: #{tpu_custom_call.1} parent=1 // loop_pre_header
      _
    $region3: #{tpu_custom_call.1} parent=1 // loop_header
      %s16 = sphi 0, %s20
      %p17 = scmp.ge.s32.totalorder %s16, 4
      %s26 = sphi 0, %s28
      %s29 = sphi 0, %s26
      %s30 = sphi 0, %s29
      %s46 = sphi 0, %s30
      %s50 = sphi 0, %s50
      %s52 = sphi 0, %s50
      %s53 = sphi 0, %s52
      %s67 = sphi 0, %s53
      %s71 = sphi 0, %s71
      %s73 = sphi 0, %s71
      %s74 = sphi 0, %s73
      %s88 = sphi 0, %s74
      %s94 = sphi 0, %s96
      %s97 = sphi 0, %s94
      %s98 = sphi 0, %s97
      %s114 = sphi 0, %s98
    $region4: #{tpu_custom_call.1} parent=1 // loop_header_branch
      %19 = sbr.rel (%p17) target = $region8
    $region5: #{tpu_custom_call.1} parent=1 // loop_body
      %s21 = ssub.s32 %s16, 1
      %s22 = ssub.s32 %s16, 2
      %s23 = sadd.s32 %s16, 1
      %s24 = ssub.s32 %s16, %s23
      %p25 = scmp.eq.s32.totalorder %s24, 0
      %s27 = sadd.s32 %s26, 1
      %s28 = scalar_select %p25, %s26, %s27
      %p31 = pneg %p25
      %p32 = scmp.eq.s32.totalorder %s16, 1
      %p33 = por %p31, %p32
      %p34 = scmp.ne.s32.totalorder %s26, %s29
      %p35 = scmp.eq.s32.totalorder %s16, 0
      %p36 = por %p34, %p35
      %p37 = scmp.ne.s32.totalorder %s26, %s29
      %p38 = scmp.eq.s32.totalorder %s21, 1
      %p39 = por %p37, %p38
      %p40 = scmp.ne.s32.totalorder %s29, %s30
      %p41 = scmp.eq.s32.totalorder %s21, 0
      %p42 = por %p40, %p41
      %p43 = scmp.ne.s32.totalorder %s29, %s30
      %p44 = scmp.eq.s32.totalorder %s22, 1
      %p45 = por %p43, %p44
      %p47 = scmp.ne.s32.totalorder %s30, %s46
      %p48 = scmp.eq.s32.totalorder %s22, 0
      %p49 = por %p47, %p48
      %s51 = sadd.s32 %s50, 1
      %p54 = scmp.eq.s32.totalorder %s16, 1
      %p55 = scmp.ne.s32.totalorder %s50, %s52
      %p56 = scmp.eq.s32.totalorder %s16, 0
      %p57 = por %p55, %p56
      %p58 = scmp.ne.s32.totalorder %s50, %s52
      %p59 = scmp.eq.s32.totalorder %s21, 1
      %p60 = por %p58, %p59
      %p61 = scmp.ne.s32.totalorder %s52, %s53
      %p62 = scmp.eq.s32.totalorder %s21, 0
      %p63 = por %p61, %p62
      %p64 = scmp.ne.s32.totalorder %s52, %s53
      %p65 = scmp.eq.s32.totalorder %s22, 1
      %p66 = por %p64, %p65
      %p68 = scmp.ne.s32.totalorder %s53, %s67
      %p69 = scmp.eq.s32.totalorder %s22, 0
      %p70 = por %p68, %p69
      %s72 = sadd.s32 %s71, 1
      %p75 = scmp.eq.s32.totalorder %s16, 1
      %p76 = scmp.ne.s32.totalorder %s71, %s73
      %p77 = scmp.eq.s32.totalorder %s16, 0
      %p78 = por %p76, %p77
      %p79 = scmp.ne.s32.totalorder %s71, %s73
      %p80 = scmp.eq.s32.totalorder %s21, 1
      %p81 = por %p79, %p80
      %p82 = scmp.ne.s32.totalorder %s73, %s74
      %p83 = scmp.eq.s32.totalorder %s21, 0
      %p84 = por %p82, %p83
      %p85 = scmp.ne.s32.totalorder %s73, %s74
      %p86 = scmp.eq.s32.totalorder %s22, 1
      %p87 = por %p85, %p86
      %p89 = scmp.ne.s32.totalorder %s74, %s88
      %p90 = scmp.eq.s32.totalorder %s22, 0
      %p91 = por %p89, %p90
      %s92 = ssub.s32 %s16, %s23
      %p93 = scmp.eq.s32.totalorder %s92, 0
      %s95 = sadd.s32 %s94, 1
      %s96 = scalar_select %p93, %s94, %s95
      %p99 = pneg %p93
      %p100 = scmp.eq.s32.totalorder %s16, 1
      %p101 = por %p99, %p100
      %p102 = scmp.ne.s32.totalorder %s94, %s97
      %p103 = scmp.eq.s32.totalorder %s16, 0
      %p104 = por %p102, %p103
      %p105 = scmp.ne.s32.totalorder %s94, %s97
      %p106 = scmp.eq.s32.totalorder %s21, 1
      %p107 = por %p105, %p106
      %p108 = scmp.ne.s32.totalorder %s97, %s98
      %p109 = scmp.eq.s32.totalorder %s21, 0
      %p110 = por %p108, %p109
      %p111 = scmp.ne.s32.totalorder %s97, %s98
      %p112 = scmp.eq.s32.totalorder %s22, 1
      %p113 = por %p111, %p112
      %p115 = scmp.ne.s32.totalorder %s98, %s114
      %p116 = scmp.eq.s32.totalorder %s22, 0
      %p117 = por %p115, %p116
      %p118 = scmp.le.s32.totalorder 1, %s16
      %p119 = scmp.lt.s32.totalorder %s16, 3
      %p120 = pnand %p118, %p119
      %p121 = pneg %p120
      // Predicated region
      $region9: #{tpu_custom_call.1} parent=5 // pred_check
        _
      $region10: #{tpu_custom_call.1} parent=5 // pred_check_branch
        %123 = sbr.rel (%p120) target = $region12
      $region11: #{tpu_custom_call.1} parent=5 // pred_region
        %s124 = ssub.s32 %s16, 1
        // Predicated region
        $region13: #{tpu_custom_call.1} parent=11 // pred_check
          %p125 = pneg %p63
        $region14: #{tpu_custom_call.1} parent=11 // pred_check_branch
          %127 = sbr.rel (%p125) target = $region16
        $region15: #{tpu_custom_call.1} parent=11 // pred_region
          %s129 = ssub.s32 1024, 1024
          %130 = vsyncadd [#allocation6], %s129
          %s131 = sshll.u32 [#allocation5], 4
          %s132 = int_to_ptr.vmem [resolvable:$true] %s131
          %137 = dma.hbm_to_vmem [thread:$0]  %s1, 1024, %s132, [#allocation6], 64, 64, 4
        $region16: #{tpu_custom_call.1} parent=11 // pred_fallthru
          _
        // Predicated region
        $region17: #{tpu_custom_call.1} parent=11 // pred_check
          %p138 = pneg %p84
        $region18: #{tpu_custom_call.1} parent=11 // pred_check_branch
          %140 = sbr.rel (%p138) target = $region20
        $region19: #{tpu_custom_call.1} parent=11 // pred_region
          _
        $region20: #{tpu_custom_call.1} parent=11 // pred_fallthru
          _
      $region12: #{tpu_custom_call.1} parent=5 // pred_fallthru
        _
      %p141 = scmp.lt.s32.totalorder %s16, 2
      // Predicated region
      $region21: #{tpu_custom_call.1} parent=5 // pred_check
        %p142 = pneg %p141
      $region22: #{tpu_custom_call.1} parent=5 // pred_check_branch
        %144 = sbr.rel (%p142) target = $region24
      $region23: #{tpu_custom_call.1} parent=5 // pred_region
        // Predicated region
        $region25: #{tpu_custom_call.1} parent=23 // pred_check
          %p145 = pneg %p36
        $region26: #{tpu_custom_call.1} parent=23 // pred_check_branch
          %147 = sbr.rel (%p145) target = $region28
        $region27: #{tpu_custom_call.1} parent=23 // pred_region
          %s148 = sand.u32 %s26, 1
          %s149 = scalar_lea.sflag [#allocation3], %s148
          %s150 = sand.u32 %s26, 1
          %s151 = smul.addr %s150, 8
          %s152 = scalar_lea.vmem [#allocation2], %s151
          %s153 = smul.u32 2, %s16
          %s155 = ssub.s32 128, 128
          %156 = vsyncadd %s149, %s155
          %s157 = smul.addr %s153, 64
          %s158 = scalar_lea.hbm %s0, %s157
          %s159 = sshll.u32 %s152, 4
          %s160 = int_to_ptr.vmem [resolvable:$true] %s159
          %165 = dma.hbm_to_vmem [thread:$0]  %s158, 128, %s160, %s149, 64, 64, 4
        $region28: #{tpu_custom_call.1} parent=23 // pred_fallthru
          _
      $region24: #{tpu_custom_call.1} parent=5 // pred_fallthru
        _
      %p166 = scmp.le.s32.totalorder 1, %s16
      %p167 = scmp.lt.s32.totalorder %s16, 3
      %p168 = pnand %p166, %p167
      %p169 = pneg %p168
      // Predicated region
      $region29: #{tpu_custom_call.1} parent=5 // pred_check
        _
      $region30: #{tpu_custom_call.1} parent=5 // pred_check_branch
        %171 = sbr.rel (%p168) target = $region32
      $region31: #{tpu_custom_call.1} parent=5 // pred_region
        %s172 = ssub.s32 %s16, 1
        %s173 = sand.u32 %s29, 1
        %s174 = scalar_lea.sflag [#allocation3], %s173
        %s175 = sand.u32 %s29, 1
        %s176 = smul.addr %s175, 8
        %s177 = scalar_lea.vmem [#allocation2], %s176
        // Predicated region
        $region33: #{tpu_custom_call.1} parent=31 // pred_check
          %p178 = pneg %p42
        $region34: #{tpu_custom_call.1} parent=31 // pred_check_branch
          %180 = sbr.rel (%p178) target = $region36
        $region35: #{tpu_custom_call.1} parent=31 // pred_region
          %181 = dma.done %s174, 128
        $region36: #{tpu_custom_call.1} parent=31 // pred_fallthru
          _
        // Predicated region
        $region37: #{tpu_custom_call.1} parent=31 // pred_check
          %p182 = pneg %p63
        $region38: #{tpu_custom_call.1} parent=31 // pred_check_branch
          %184 = sbr.rel (%p182) target = $region40
        $region39: #{tpu_custom_call.1} parent=31 // pred_region
          %185 = dma.done [#allocation6], 1024
        $region40: #{tpu_custom_call.1} parent=31 // pred_fallthru
          _
        %s186 = sand.u32 %s29, 1
        %s187 = scalar_lea.sflag [#allocation3], %s186
        %s188 = sand.u32 %s29, 1
        %s189 = smul.addr %s188, 8
        %s190 = scalar_lea.vmem [#allocation2], %s189
        %p191 = pneg %p42
        %p192 = pneg %p39
        %p193 = pneg %p63
        %p194 = pneg %p60
        %p195 = pneg %p84
        %p196 = pneg %p81
        %p197 = pneg %p110
        %p198 = pneg %p107
        %s199 = sand.u32 %s97, 1
        %s200 = scalar_lea.sflag [#allocation4], %s199
        %s201 = sand.u32 %s97, 1
        %s202 = smul.addr %s201, 16
        %s203 = scalar_lea.vmem [#allocation7], %s202
        %s204 = smul.u32 2, %s21
        %s205 = smul.u32 2, %s21
        %v207 = vld [vmem:[%s177] sm:$0xf]
        %v208 = vld [vmem:[%s177 + $0x4] sm:$0xf]
        %v209 = vld [vmem:[#allocation5] sm:$0xf]
        %v210 = vld [vmem:[#allocation5 + $0x4] sm:$0xf]
        %v211 = vld [vmem:[#allocation5 + $0x8] sm:$0xf]
        %v212 = vld [vmem:[#allocation5 + $0xc] sm:$0xf]
        %v213 = vld [vmem:[#allocation5 + $0x10] sm:$0xf]
        %v214 = vld [vmem:[#allocation5 + $0x14] sm:$0xf]
        %v215 = vld [vmem:[#allocation5 + $0x18] sm:$0xf]
        %v216 = vld [vmem:[#allocation5 + $0x1c] sm:$0xf]
        %v217 = vld [vmem:[#allocation5 + $0x20] sm:$0xf]
        %v218 = vld [vmem:[#allocation5 + $0x24] sm:$0xf]
        %v219 = vld [vmem:[#allocation5 + $0x28] sm:$0xf]
        %v220 = vld [vmem:[#allocation5 + $0x2c] sm:$0xf]
        %v221 = vld [vmem:[#allocation5 + $0x30] sm:$0xf]
        %v222 = vld [vmem:[#allocation5 + $0x34] sm:$0xf]
        %v223 = vld [vmem:[#allocation5 + $0x38] sm:$0xf]
        %v224 = vld [vmem:[#allocation5 + $0x3c] sm:$0xf]
        %v225 = vld [vmem:[%s2] sm:$0x1]
        %v226 = vld [vmem:[%s2 + $0x1] sm:$0x1]
        %v227 = vld [vmem:[%s2 + $0x2] sm:$0x1]
        %v228 = vlaneseq
        %v229 = vshrl.u32 %v228, 7
        %v230 = vsub.s32 0, %v229
        %v231 = vrot.slane %v225, %v230
        %v234 = vunpack.c.l.b16 %v207
        %v235 = vunpack.c.l.b16 %v208
        %v236 = vpack.c.b16 %v235, %v234
        %v254 = vunpack.c.l.b16 %v209
        %v255 = vunpack.c.l.b16 %v210
        %v256 = vunpack.c.l.b16 %v211
        %v257 = vunpack.c.l.b16 %v212
        %v258 = vunpack.c.l.b16 %v213
        %v259 = vunpack.c.l.b16 %v214
        %v260 = vunpack.c.l.b16 %v215
        %v261 = vunpack.c.l.b16 %v216
        %v262 = vunpack.c.l.b16 %v217
        %v263 = vunpack.c.l.b16 %v218
        %v264 = vunpack.c.l.b16 %v219
        %v265 = vunpack.c.l.b16 %v220
        %v266 = vunpack.c.l.b16 %v221
        %v267 = vunpack.c.l.b16 %v222
        %v268 = vunpack.c.l.b16 %v223
        %v269 = vunpack.c.l.b16 %v224
        %v270 = vpack.c.b16 %v255, %v254
        %v271 = vpack.c.b16 %v257, %v256
        %v272 = vpack.c.b16 %v259, %v258
        %v273 = vpack.c.b16 %v261, %v260
        %v274 = vpack.c.b16 %v263, %v262
        %v275 = vpack.c.b16 %v265, %v264
        %v276 = vpack.c.b16 %v267, %v266
        %v277 = vpack.c.b16 %v269, %v268
        %286 = vmatprep.subr.bf16.mxu0 0
        %287 = vmatpush1.bf16.msra.mxu0 %v270
        %288 = vmatprep.subr.bf16.mxu0 0
        %289 = vmatpush1.bf16.msra.mxu0 %v271
        %290 = vmatprep.subr.bf16.mxu0 0
        %291 = vmatpush1.bf16.msra.mxu0 %v272
        %292 = vmatprep.subr.bf16.mxu0 0
        %293 = vmatpush1.bf16.msra.mxu0 %v273
        %294 = vmatprep.subr.bf16.mxu0 0
        %295 = vmatpush1.bf16.msra.mxu0 %v274
        %296 = vmatprep.subr.bf16.mxu0 0
        %297 = vmatpush1.bf16.msra.mxu0 %v275
        %298 = vmatprep.subr.bf16.mxu0 0
        %299 = vmatpush1.bf16.msra.mxu0 %v276
        %300 = vmatprep.subr.bf16.mxu0 0
        %301 = vmatpush1.bf16.msra.mxu0 %v277
        %302 = vmatprep.subr.bf16.mxu0 0
        %303 = vmatpush1.bf16.msra.mxu0 0
        %304 = vmatprep.subr.bf16.mxu0 0
        %305 = vmatpush1.bf16.msra.mxu0 0
        %306 = vmatprep.subr.bf16.mxu0 0
        %307 = vmatpush1.bf16.msra.mxu0 0
        %308 = vmatprep.subr.bf16.mxu0 0
        %309 = vmatpush1.bf16.msra.mxu0 0
        %310 = vmatprep.subr.bf16.mxu0 0
        %311 = vmatpush1.bf16.msra.mxu0 0
        %312 = vmatprep.subr.bf16.mxu0 0
        %313 = vmatpush1.bf16.msra.mxu0 0
        %314 = vmatprep.subr.bf16.mxu0 0
        %315 = vmatpush1.bf16.msra.mxu0 0
        %316 = vmatprep.subr.bf16.mxu0 0
        %317 = vmatpush1.bf16.msra.mxu0 0
        %318 = vmatprep.mubr.bf16.mxu0 0
        %319 = vmatmul.mubr.bf16.gmra.mrb[0].mxu0 %v236
        %v320 = vpop.f32.mrb[0].mxu0
        %v321 = vadd.f32 %v231, %v320
        %v322 = vpop.f32.mrb[0].mxu0
        %v323 = vpop.f32.mrb[0].mxu0
        %v324 = vadd.f32 %v231, %v323
        %v325 = vpop.f32.mrb[0].mxu0
        %326 = vdwg.mxu0
        %327 = vadd.xlane.f32.xlu0 %v321
        %v328 = vpop.xlane.xlu0 %327
        %329 = vadd.xlane.f32.xlu0 %v324
        %v330 = vpop.xlane.xlu0 %329
        %v331 = vmul.f32 %v328, 0.03125
        %v332 = vmul.f32 %v330, 0.03125
        %v333 = vmul.f32 %v321, %v321
        %v334 = vmul.f32 %v324, %v324
        %335 = vadd.xlane.f32.xlu0 %v333
        %v336 = vpop.xlane.xlu0 %335
        %337 = vadd.xlane.f32.xlu0 %v334
        %v338 = vpop.xlane.xlu0 %337
        %v339 = vmul.f32 %v336, 0.03125
        %v340 = vmul.f32 %v338, 0.03125
        %v341 = vmul.f32 %v331, %v331
        %v342 = vmul.f32 %v332, %v332
        %v343 = vsub.f32 %v339, %v341
        %v344 = vsub.f32 %v340, %v342
        %v345 = vsub.f32 %v321, %v331
        %v346 = vsub.f32 %v324, %v332
        %v347 = vadd.f32 %v343, 1e-05
        %v348 = vadd.f32 %v344, 1e-05
        %v349 = vrsqrt.pop %v347
        %v350 = vrsqrt.pop %v348
        %v351 = vmul.f32 %v345, %v349
        %v352 = vmul.f32 %v346, %v350
        %v353 = vlaneseq
        %v354 = vshrl.u32 %v353, 7
        %v355 = vsub.s32 0, %v354
        %v356 = vrot.slane %v226, %v355
        %v357 = vmul.f32 %v351, %v356
        %v358 = vmul.f32 %v352, %v356
        %v359 = vlaneseq
        %v360 = vshrl.u32 %v359, 7
        %v361 = vsub.s32 0, %v360
        %v362 = vrot.slane %v227, %v361
        %v363 = vadd.f32 %v357, %v362
        %v364 = vadd.f32 %v358, %v362
        %365 = vst [vmem:[%s203] sm:$0xff] %v363
        %366 = vst [vmem:[%s203 + $0x8] sm:$0xff] %v364
        %s367 = sand.u32 %s97, 1
        %s368 = scalar_lea.sflag [#allocation4], %s367
        %s369 = sand.u32 %s97, 1
        %s370 = smul.addr %s369, 16
        %s371 = scalar_lea.vmem [#allocation7], %s370
        // Predicated region
        $region41: #{tpu_custom_call.1} parent=31 // pred_check
          %p372 = pneg %p107
        $region42: #{tpu_custom_call.1} parent=31 // pred_check_branch
          %374 = sbr.rel (%p372) target = $region44
        $region43: #{tpu_custom_call.1} parent=31 // pred_region
          %s375 = smul.u32 2, %s21
          %s377 = ssub.s32 256, 256
          %378 = vsyncadd %s368, %s377
          %s379 = smul.addr %s375, 128
          %s380 = scalar_lea.hbm %s3, %s379
          %s381 = sshll.u32 %s371, 4
          %s382 = int_to_ptr.vmem [resolvable:$true] %s381
          %387 = dma.vmem_to_hbm [thread:$0]  %s382, 256, %s380, %s368, 128, 128, 8
        $region44: #{tpu_custom_call.1} parent=31 // pred_fallthru
          _
      $region32: #{tpu_custom_call.1} parent=5 // pred_fallthru
        _
      %p388 = scmp.le.s32.totalorder 2, %s16
      // Predicated region
      $region45: #{tpu_custom_call.1} parent=5 // pred_check
        %p389 = pneg %p388
      $region46: #{tpu_custom_call.1} parent=5 // pred_check_branch
        %391 = sbr.rel (%p389) target = $region48
      $region47: #{tpu_custom_call.1} parent=5 // pred_region
        %s392 = ssub.s32 %s16, 2
        // Predicated region
        $region49: #{tpu_custom_call.1} parent=47 // pred_check
          %p393 = pneg %p113
        $region50: #{tpu_custom_call.1} parent=47 // pred_check_branch
          %395 = sbr.rel (%p393) target = $region52
        $region51: #{tpu_custom_call.1} parent=47 // pred_region
          %s396 = sand.u32 %s98, 1
          %s397 = scalar_lea.sflag [#allocation4], %s396
          %s398 = sand.u32 %s98, 1
          %s399 = smul.addr %s398, 16
          %s400 = scalar_lea.vmem [#allocation7], %s399
          %401 = dma.done %s397, 256
        $region52: #{tpu_custom_call.1} parent=47 // pred_fallthru
          _
      $region48: #{tpu_custom_call.1} parent=5 // pred_fallthru
        _
    $region6: #{tpu_custom_call.1} parent=1 // loop_footer
      %s20 = sadd.s32 1, %s16
    $region7: #{tpu_custom_call.1} parent=1 // loop_footer_branch
      %15 = sbr.rel target = $region3
    $region8: #{tpu_custom_call.1} parent=1 // loop_exit
      _
    %402 = vsyncpa [#allocation3], 1
    %s403 = scalar_lea.sflag [#allocation3], 1
    %404 = vsyncpa %s403, 1
    %405 = vsyncpa [#allocation6], 1
    %406 = vsyncpa [#allocation4], 1
    %s407 = scalar_lea.sflag [#allocation4], 1
    %408 = vsyncpa %s407, 1

</llo_original>
